<compile_context>
chip_gen: v6e
topology: v6e:2x2x1
jax: 0.10.0
libtpu: 0.0.40
codegen_flags: <defaults>
</compile_context>

<pallas_src>
import functools

import jax
import jax.numpy as jnp
from jax.experimental import pallas as pl
from jax.experimental.pallas import tpu as pltpu


# --------------------------------------------------------------------------
# activation math (runs inside the kernels)
# --------------------------------------------------------------------------
def _gelu_tanh(x):
    # matches the torch.jit gelu in the module:
    # x * 0.5 * (1 + tanh(0.79788456 * x * (1 + 0.044715 * x * x)))
    return x * 0.5 * (1.0 + jnp.tanh(0.79788456 * x * (1.0 + 0.044715 * x * x)))


def _apply_ungated(name, x):
    if name == "relu":
        return jnp.maximum(x, 0)
    if name == "relu_squared":
        r = jnp.maximum(x, 0)
        return r * r
    if name == "gelu":
        return _gelu_tanh(x)
    if name == "tanh":
        return jnp.tanh(x)
    if name == "linear":
        return x
    raise RuntimeError(f"--activation-fn {name} not supported (ungated)")


def _apply_gated(name, x, gate):
    if name == "swiglu":
        # F.silu(x) * gate
        return x * jax.nn.sigmoid(x) * gate
    if name == "geglu":
        return _gelu_tanh(x) * gate
    raise RuntimeError(f"--activation-fn {name} not supported (gated)")


# --------------------------------------------------------------------------
# tile / VMEM helpers
# --------------------------------------------------------------------------
def _tile(requested, dim, align):
    """Clamp a requested tile to the array dim, keeping (8,128) legality."""
    if requested >= dim:
        return dim                       # full extent is always legal
    t = (requested // align) * align
    return t if t > 0 else dim


def _vmem_cap():
    """Per-chip VMEM budget (64 MiB v7x / 128 MiB v5e-v6e) minus headroom."""
    try:
        cap = int(pltpu.get_tpu_info().vmem_capacity_bytes)
    except Exception:
        cap = 64 << 20                   # conservative fallback (v7x per-TC)
    return max(cap - (16 << 20), 32 << 20)


# --------------------------------------------------------------------------
# Pallas kernels
# --------------------------------------------------------------------------
def _eltwise_kernel(h_ref, o_ref, *, name):
    h = h_ref[...]
    if name in ("gelu", "tanh"):
        # transcendentals in f32 (v5e has no bf16 EUP; precision-safe everywhere)
        h = h.astype(jnp.float32)
    o_ref[...] = _apply_ungated(name, h).astype(o_ref.dtype)


def _gated_resident_kernel(x_ref, w_ref, b_ref, h_ref, o_ref, *, name):
    # K collapsed: whole (E, tn) weight tile is in VMEM; one MXU pass per block.
    x = x_ref[...].astype(w_ref.dtype)
    gate = jnp.dot(x, w_ref[...], preferred_element_type=jnp.float32)
    gate = gate + b_ref[...].astype(jnp.float32)
    h = h_ref[...].astype(jnp.float32)
    o_ref[...] = _apply_gated(name, h, gate).astype(o_ref.dtype)


def _gated_ksplit_kernel(x_ref, w_ref, b_ref, h_ref, o_ref, acc_ref, *, name):
    # grid = (T//tm, F//tn, E//tk); K (reduction) axis is last / "arbitrary".
    # The reduction dim is pre-padded with zeros in the wrapper, so there is
    # no per-step tail mask in this hot loop.
    k = pl.program_id(2)
    nk = pl.num_programs(2)

    @pl.when(k == 0)
    def _():
        # fold the bias add into the accumulator init (cheaper epilogue)
        acc_ref[...] = jnp.broadcast_to(
            b_ref[...].astype(jnp.float32), acc_ref.shape
        )

    x = x_ref[...].astype(w_ref.dtype)
    acc_ref[...] += jnp.dot(x, w_ref[...], preferred_element_type=jnp.float32)

    @pl.when(k == nk - 1)
    def _():
        h = h_ref[...].astype(jnp.float32)
        o_ref[...] = _apply_gated(name, h, acc_ref[...]).astype(o_ref.dtype)


# --------------------------------------------------------------------------
# wrappers
# --------------------------------------------------------------------------
def _ungated_call(name, fc1_out, *, tm=512, tn=2048):
    T, F = fc1_out.shape
    cap = _vmem_cap()
    isz = jnp.dtype(fc1_out.dtype).itemsize
    tm = _tile(tm, T, 8)
    tn = _tile(tn, F, 128)
    grid = (pl.cdiv(T, tm), pl.cdiv(F, tn))

    # double-buffered input tile + double-buffered output tile
    need = 4 * tm * tn * isz
    vmem_limit = min(int(need * 1.5) + (2 << 20), cap)

    cost = pl.CostEstimate(
        flops=4 * T * F,
        transcendentals=T * F if name in ("gelu", "tanh") else 0,
        bytes_accessed=2 * T * F * isz,
    )

    return pl.pallas_call(
        functools.partial(_eltwise_kernel, name=name),
        out_shape=jax.ShapeDtypeStruct((T, F), fc1_out.dtype),
        grid_spec=pltpu.PrefetchScalarGridSpec(
            num_scalar_prefetch=0,
            grid=grid,
            in_specs=[pl.BlockSpec((tm, tn), lambda i, j: (i, j))],
            out_specs=pl.BlockSpec((tm, tn), lambda i, j: (i, j)),
        ),
        compiler_params=pltpu.CompilerParams(
            dimension_semantics=("parallel", "parallel"),
            vmem_limit_bytes=vmem_limit,
        ),
        cost_estimate=cost,
    )(fc1_out)


def _gated_call(name, fc1_in, fc1_out, w, b, *, tm=512, tn=1024, tk=512,
                force_ksplit=False):
    T, E = fc1_in.shape
    _, F = fc1_out.shape
    cap = _vmem_cap()

    # Feed the MXU in the (narrow) weight dtype: cast fc1_in down once in the
    # wrapper so every re-streamed x tile moves at the narrow width too.
    if jnp.dtype(w.dtype).itemsize < jnp.dtype(fc1_in.dtype).itemsize:
        fc1_in = fc1_in.astype(w.dtype)

    tm = _tile(tm, T, 8)
    tn = _tile(tn, F, 128)

    isz_x = jnp.dtype(fc1_in.dtype).itemsize
    isz_w = jnp.dtype(w.dtype).itemsize
    isz_h = jnp.dtype(fc1_out.dtype).itemsize

    b2 = b.reshape(1, F).astype(jnp.float32)

    # -------- variant 1: weight-resident (K collapsed, W streamed once) -----
    resident_need = 2 * (tm * E * isz_x + E * tn * isz_w + 8 * tn * 4
                         + 2 * tm * tn * isz_h)
    if not force_ksplit and resident_need <= cap:
        ni, nj = pl.cdiv(T, tm), pl.cdiv(F, tn)
        cost = pl.CostEstimate(
            flops=2 * T * E * F + 6 * T * F,
            transcendentals=T * F,           # exp (swiglu) / tanh (geglu)
            bytes_accessed=int(T * E * isz_x * nj + E * F * isz_w + F * 4
                               + 2 * T * F * isz_h),
        )
        vmem_limit = min(int(resident_need * 1.25) + (2 << 20), cap)
        return pl.pallas_call(
            functools.partial(_gated_resident_kernel, name=name),
            out_shape=jax.ShapeDtypeStruct((T, F), fc1_out.dtype),
            grid_spec=pltpu.PrefetchScalarGridSpec(
                num_scalar_prefetch=0,
                # j (N) outer, i (M) inner -> the (E, tn) weight tile's block
                # index is constant across the inner loop, so Pallas keeps it
                # resident and the gate weight leaves HBM exactly once.
                grid=(nj, ni),
                in_specs=[
                    pl.BlockSpec((tm, E), lambda j, i: (i, 0)),    # fc1_in
                    pl.BlockSpec((E, tn), lambda j, i: (0, j)),    # gate W [E,F]
                    pl.BlockSpec((1, tn), lambda j, i: (0, j)),    # gate bias
                    pl.BlockSpec((tm, tn), lambda j, i: (i, j)),   # fc1_out
                ],
                out_specs=pl.BlockSpec((tm, tn), lambda j, i: (i, j)),
            ),
            compiler_params=pltpu.CompilerParams(
                # NOTE(v7x): with big tiles keep at least one parallel extent
                # >= 2 so the grid can shard across both TensorCores.
                dimension_semantics=("parallel", "parallel"),
                vmem_limit_bytes=vmem_limit,
            ),
            cost_estimate=cost,
        )(fc1_in, w, b2, fc1_out)

    # -------- variant 2: K-split with f32 accumulator scratch ---------------
    tk = _tile(tk, E, 128)
    if E % tk:
        # Zero-pad the reduction dim once here so the kernel never needs a
        # per-K-step tail mask (zeros contribute nothing to the gate).
        e_pad = pl.cdiv(E, tk) * tk
        fc1_in = jnp.pad(fc1_in, ((0, 0), (0, e_pad - E)))
        w = jnp.pad(w, ((0, e_pad - E), (0, 0)))
        E = e_pad

    ni, nj, nk = pl.cdiv(T, tm), pl.cdiv(F, tn), E // tk
    need = (2 * (tm * tk * isz_x + tk * tn * isz_w + 8 * tn * 4
                 + 2 * tm * tn * isz_h)
            + tm * tn * 4)                   # acc scratch
    vmem_limit = min(int(need * 1.25) + (2 << 20), cap)

    cost = pl.CostEstimate(
        flops=2 * T * E * F + 6 * T * F,
        transcendentals=T * F,
        bytes_accessed=int(T * E * isz_x * nj + E * F * isz_w * ni + F * 4
                           + 2 * T * F * isz_h),
    )

    # TODO(synk): the fc1_out (h) tile is only consumed at k == nk-1; on the
    # VMEM-tight v7x it could be single-buffered (pipeline_mode=pl.Buffered(1))
    # to fund a larger tn/tk.
    return pl.pallas_call(
        functools.partial(_gated_ksplit_kernel, name=name),
        out_shape=jax.ShapeDtypeStruct((T, F), fc1_out.dtype),
        grid_spec=pltpu.PrefetchScalarGridSpec(
            num_scalar_prefetch=0,
            grid=(ni, nj, nk),
            in_specs=[
                pl.BlockSpec((tm, tk), lambda i, j, k: (i, k)),   # fc1_in
                pl.BlockSpec((tk, tn), lambda i, j, k: (k, j)),   # gate W [E,F]
                pl.BlockSpec((1, tn), lambda i, j, k: (0, j)),    # gate bias
                pl.BlockSpec((tm, tn), lambda i, j, k: (i, j)),   # fc1_out
            ],
            out_specs=pl.BlockSpec((tm, tn), lambda i, j, k: (i, j)),
            scratch_shapes=[pltpu.VMEM((tm, tn), jnp.float32)],
        ),
        compiler_params=pltpu.CompilerParams(
            dimension_semantics=("parallel", "parallel", "arbitrary"),
            vmem_limit_bytes=vmem_limit,
        ),
        cost_estimate=cost,
    )(fc1_in, w, b2, fc1_out)


class ActivationFn:
    """JAX/Pallas port of metaseq ActivationFn.

    For gated activations ('swiglu', 'geglu') the gate Linear(embed_dim, ffn_dim)
    is built with deterministic synthetic parameters (the torch module takes an
    arbitrary fc1_builder); its matmul + bias + the gated elementwise activation
    are fused in a single Pallas kernel.  The gate weight is kept in `mxu_dtype`
    (bf16 by default) and accumulated in f32 on the MXU.
    """

    _GATED = ("swiglu", "geglu")
    _UNGATED = ("relu", "relu_squared", "gelu", "tanh", "linear")

    def __init__(self, name, embed_dim, ffn_dim, dtype=jnp.float32,
                 mxu_dtype=jnp.bfloat16, seed=0):
        if name not in self._GATED + self._UNGATED:
            raise RuntimeError(f"--activation-fn {name} not supported")
        self.name = name
        self.gate_params = None
        if name in self._GATED:
            kw, kb = jax.random.split(jax.random.PRNGKey(seed))
            bound = 1.0 / (embed_dim ** 0.5)  # nn.Linear default init range
            # store weight pre-transposed: [embed_dim, ffn_dim]
            w = jax.random.uniform(
                kw, (embed_dim, ffn_dim), jnp.float32, minval=-bound, maxval=bound
            )
            b = jax.random.uniform(
                kb, (ffn_dim,), jnp.float32, minval=-bound, maxval=bound
            )
            w_dtype = mxu_dtype if mxu_dtype is not None else dtype
            self.gate_params = (w.astype(w_dtype), b.astype(dtype))

    def __call__(self, fc1_in, fc1_out, model_parallel: bool = False):
        # model_parallel only changes how the torch fc1 returns (tuple vs tensor);
        # numerically identical here.
        if self.name == "linear" and self.gate_params is None:
            return fc1_out                     # pure copy: skip the kernel
        lead = fc1_out.shape[:-1]
        F = fc1_out.shape[-1]
        h2d = fc1_out.reshape(-1, F)
        if self.gate_params is not None:
            E = fc1_in.shape[-1]
            x2d = fc1_in.reshape(-1, E)
            w, b = self.gate_params
            out2d = _gated_call(self.name, x2d, h2d, w, b)
        else:
            out2d = _ungated_call(self.name, h2d)
        return out2d.reshape(*lead, F)


# --------------------------------------------------------------------------
# pure-JAX reference for a sanity check
# --------------------------------------------------------------------------
def _ref(name, fc1_in, fc1_out, gate_params):
    if gate_params is not None:
        w, b = gate_params
        x = fc1_in
        if jnp.dtype(w.dtype).itemsize < jnp.dtype(x.dtype).itemsize:
            x = x.astype(w.dtype)
        x2 = x.reshape(-1, x.shape[-1])
        g = jnp.dot(x2, w, preferred_element_type=jnp.float32)
        g = g + b.astype(jnp.float32)
        g = g.reshape(*fc1_out.shape[:-1], -1)
        return _apply_gated(
            name, fc1_out.astype(jnp.float32), g
        ).astype(fc1_out.dtype)
    x = fc1_out
    if name in ("gelu", "tanh"):
        return _apply_ungated(name, x.astype(jnp.float32)).astype(fc1_out.dtype)
    return _apply_ungated(name, x)


if __name__ == "__main__":
    batch, seq = 2, 8
    embed_dim, ffn_dim = 128, 256

    key = jax.random.PRNGKey(0)
    k1, k2, k3 = jax.random.split(key, 3)
    fc1_in = jax.random.normal(k1, (batch, seq, embed_dim), jnp.float32)
    fc1_out = jax.random.normal(k2, (batch, seq, ffn_dim), jnp.float32)

    ok = True
    # gated path (fused bf16 matmul + bias + swiglu/geglu) -> weight-resident
    for name in ("swiglu", "geglu"):
        mod = ActivationFn(name, embed_dim, ffn_dim)
        y = jax.block_until_ready(mod(fc1_in, fc1_out, model_parallel=False))
        y_ref = _ref(name, fc1_in, fc1_out, mod.gate_params)
        ok &= bool(jnp.allclose(y, y_ref, atol=5e-3, rtol=5e-3))

    # ungated path (elementwise; 'linear' bypasses the kernel)
    for name in ("relu", "relu_squared", "gelu", "tanh", "linear"):
        mod = ActivationFn(name, embed_dim, ffn_dim)
        y = jax.block_until_ready(mod(fc1_in, fc1_out, model_parallel=False))
        y_ref = _ref(name, fc1_in, fc1_out, None)
        ok &= bool(jnp.allclose(y, y_ref, atol=1e-5, rtol=1e-5))

    # explicit exercise of the K-split accumulator variant with a padded
    # reduction tail (E=384 not a multiple of tk=256).
    E2 = 384
    x2 = jax.random.normal(k3, (16, E2), jnp.float32)
    modm = ActivationFn("swiglu", E2, ffn_dim)
    w2, b2 = modm.gate_params
    h2 = fc1_out.reshape(-1, ffn_dim)
    y2 = jax.block_until_ready(
        _gated_call("swiglu", x2, h2, w2, b2, tm=256, tn=256, tk=256,
                    force_ksplit=True)
    )
    g2 = jnp.dot(x2.astype(w2.dtype), w2,
                 preferred_element_type=jnp.float32) + b2
    y2_ref = _apply_gated("swiglu", h2, g2)
    ok &= bool(jnp.allclose(y2, y2_ref, atol=5e-3, rtol=5e-3))

    if ok:
        print("KERNEL_OK")
    else:
        print("KERNEL_MISMATCH")
</pallas_src>

<mosaic_0001>
module attributes {stable_mosaic.version = 11 : i64} {
  func.func @_gated_resident_kernel(%arg0: i32, %arg1: i32, %arg2: memref<16x128xbf16, #tpu.memory_space<vmem>>, %arg3: memref<128x256xbf16, #tpu.memory_space<vmem>>, %arg4: memref<1x256xf32, #tpu.memory_space<vmem>>, %arg5: memref<16x256xf32, #tpu.memory_space<vmem>>, %arg6: memref<16x256xf32, #tpu.memory_space<vmem>>) attributes {dimension_semantics = [#tpu.dimension_semantics<parallel>, #tpu.dimension_semantics<parallel>], iteration_bounds = array<i64: 1, 1>, scalar_prefetch = 0 : i64, scratch_operands = 0 : i64, tpu.core_type = #tpu.core_type<tc>, window_params = [{transform_indices = @transform_0, window_bounds = array<i64: 16, 128>}, {transform_indices = @transform_1, window_bounds = array<i64: 128, 256>}, {transform_indices = @transform_2, window_bounds = array<i64: 1, 256>}, {transform_indices = @transform_3, window_bounds = array<i64: 16, 256>}, {transform_indices = @transform_4, window_bounds = array<i64: 16, 256>}]} {
    %c0 = arith.constant 0 : index
    %c0_0 = arith.constant 0 : index
    %0 = vector.load %arg2[%c0, %c0_0] : memref<16x128xbf16, #tpu.memory_space<vmem>>, vector<16x128xbf16>
    %c0_1 = arith.constant 0 : index
    %c0_2 = arith.constant 0 : index
    %1 = vector.load %arg3[%c0_1, %c0_2] : memref<128x256xbf16, #tpu.memory_space<vmem>>, vector<128x256xbf16>
    %cst = arith.constant dense<0.000000e+00> : vector<16x256xf32>
    %2 = tpu.matmul %0, %1, %cst {dimension_numbers = #tpu.dot_dimension_numbers<[1], [0], [0], [1], [0, 0, 1, 1], [], []>} : vector<16x128xbf16>, vector<128x256xbf16>, vector<16x256xf32> -> vector<16x256xf32>
    %c0_3 = arith.constant 0 : index
    %c0_4 = arith.constant 0 : index
    %3 = vector.load %arg4[%c0_3, %c0_4] : memref<1x256xf32, #tpu.memory_space<vmem>>, vector<1x256xf32>
    %4 = vector.broadcast %3 : vector<1x256xf32> to vector<16x256xf32>
    %5 = arith.addf %2, %4 : vector<16x256xf32>
    %c0_5 = arith.constant 0 : index
    %c0_6 = arith.constant 0 : index
    %6 = vector.load %arg5[%c0_5, %c0_6] : memref<16x256xf32, #tpu.memory_space<vmem>>, vector<16x256xf32>
    %7 = arith.negf %6 : vector<16x256xf32>
    %8 = math.exp %7 : vector<16x256xf32>
    %cst_7 = arith.constant 1.000000e+00 : f32
    %9 = vector.broadcast %cst_7 : f32 to vector<16x256xf32>
    %10 = arith.addf %9, %8 : vector<16x256xf32>
    %11 = arith.divf %9, %10 : vector<16x256xf32>
    %12 = arith.mulf %6, %11 : vector<16x256xf32>
    %13 = arith.mulf %12, %5 : vector<16x256xf32>
    %c0_8 = arith.constant 0 : index
    %c0_9 = arith.constant 0 : index
    %14 = vector.load %arg6[%c0_8, %c0_9] : memref<16x256xf32, #tpu.memory_space<vmem>>, vector<16x256xf32>
    tpu.vector_store %arg6[%c0_8, %c0_9], %13 {strides = array<i32>} : memref<16x256xf32, #tpu.memory_space<vmem>>, vector<16x256xf32>,
    return
  }
  func.func @transform_0(%arg0: i32, %arg1: i32) -> (i32, i32) {
    %c0_i32 = arith.constant 0 : i32
    %c0_i32_0 = arith.constant 0 : i32
    return %arg1, %c0_i32 : i32, i32
  }
  func.func @transform_1(%arg0: i32, %arg1: i32) -> (i32, i32) {
    %c0_i32 = arith.constant 0 : i32
    %c0_i32_0 = arith.constant 0 : i32
    return %c0_i32, %arg0 : i32, i32
  }
  func.func @transform_2(%arg0: i32, %arg1: i32) -> (i32, i32) {
    %c0_i32 = arith.constant 0 : i32
    %c0_i32_0 = arith.constant 0 : i32
    return %c0_i32, %arg0 : i32, i32
  }
  func.func @transform_3(%arg0: i32, %arg1: i32) -> (i32, i32) {
    %c0_i32 = arith.constant 0 : i32
    return %arg1, %arg0 : i32, i32
  }
  func.func @transform_4(%arg0: i32, %arg1: i32) -> (i32, i32) {
    %c0_i32 = arith.constant 0 : i32
    return %arg1, %arg0 : i32, i32
  }
}

</mosaic_0001>

<llo_original>
// kernel: tpu_custom_call.1
$region0: #{tpu_custom_call.1}
  #allocation0 [shape = 'u32[]', space=smem, size = 0x4, offset = 0x4, fixed_abs, tag = 'smem constant byte address 0x4 - core index']
  #allocation1 [shape = 'u32[144,128]{1,0:T(1,128)}', space=vmem, size = 0x12000, scoped, tag = 'internal scratch']
  %s0 = inlined_call_operand.hbm [shape: bf16[16,128], index: 0, kind: input, shape index: {}]
  %s1 = inlined_call_operand.hbm [shape: bf16[128,256], index: 1, kind: input, shape index: {}]
  %s2 = inlined_call_operand.vmem [shape: f32[1,256], index: 2, kind: input, shape index: {}]
  %s3 = inlined_call_operand.hbm [shape: f32[16,256], index: 3, kind: input, shape index: {}]
  %s4 = inlined_call_operand.hbm [shape: f32[16,256], index: 4, kind: output, shape index: {}]
  %s5 = sld [smem:[#allocation0]]
  $region38: #{tpu_custom_call.1} parent=0
    _
  %s7 = ssub.s32 1, %s5
  %s8 = scalar_select 0, %s7, %s5
  $region1: #{tpu_custom_call.1} parent=0
    #allocation2 [shape = 'u8[4096]{0}', space=vmem, size = 0x1000, scoped, tag = 'input window, operand 0, single buffered']
    #allocation3 [shape = 's32[1]{0}', space=sflag, size = 0x4, scoped, tag = 'scoped memory for tpu_custom_call.1']
    #allocation4 [shape = 's32[1]{0}', space=sflag, size = 0x4, scoped, tag = 'scoped memory for tpu_custom_call.1']
    #allocation5 [shape = 'u8[65536]{0}', space=vmem, size = 0x10000, scoped, tag = 'input window, operand 1, single buffered']
    #allocation6 [shape = 's32[1]{0}', space=sflag, size = 0x4, scoped, tag = 'scoped memory for tpu_custom_call.1']
    #allocation7 [shape = 'u8[16384]{0}', space=vmem, size = 0x4000, scoped, tag = 'input window, operand 3, single buffered']
    #allocation8 [shape = 'u8[16384]{0}', space=vmem, size = 0x4000, scoped, tag = 'output window, operand 0, single buffered']
    %9 = vsyncpa [#allocation3], 0
    %10 = vsyncpa [#allocation6], 0
    %11 = vsyncpa [#allocation4], 0
    // Predicated region
    $region2: #{tpu_custom_call.1} parent=1 // pred_check
      _
    $region3: #{tpu_custom_call.1} parent=1 // pred_check_branch
      %13 = sbr.rel (0) target = $region5
    $region4: #{tpu_custom_call.1} parent=1 // pred_region
      %s15 = ssub.s32 128, 128
      %16 = vsyncadd [#allocation3], %s15
      %s17 = sshll.u32 [#allocation2], 4
      %s18 = int_to_ptr.vmem [resolvable:$true] %s17
      %23 = dma.hbm_to_vmem [thread:$0]  %s0, 128, %s18, [#allocation3], 64, 64, 4
    $region5: #{tpu_custom_call.1} parent=1 // pred_fallthru
      _
    // Predicated region
    $region6: #{tpu_custom_call.1} parent=1 // pred_check
      _
    $region7: #{tpu_custom_call.1} parent=1 // pred_check_branch
      %25 = sbr.rel (0) target = $region9
    $region8: #{tpu_custom_call.1} parent=1 // pred_region
      %s27 = ssub.s32 2048, 2048
      %28 = vsyncadd [#allocation6], %s27
      %s29 = sshll.u32 [#allocation5], 4
      %s30 = int_to_ptr.vmem [resolvable:$true] %s29
      %35 = dma.hbm_to_vmem [thread:$0]  %s1, 2048, %s30, [#allocation6], 128, 128, 8
    $region9: #{tpu_custom_call.1} parent=1 // pred_fallthru
      _
    // Predicated region
    $region10: #{tpu_custom_call.1} parent=1 // pred_check
      _
    $region11: #{tpu_custom_call.1} parent=1 // pred_check_branch
      %37 = sbr.rel (0) target = $region13
    $region12: #{tpu_custom_call.1} parent=1 // pred_region
      _
    $region13: #{tpu_custom_call.1} parent=1 // pred_fallthru
      _
    // Predicated region
    $region14: #{tpu_custom_call.1} parent=1 // pred_check
      _
    $region15: #{tpu_custom_call.1} parent=1 // pred_check_branch
      %39 = sbr.rel (0) target = $region17
    $region16: #{tpu_custom_call.1} parent=1 // pred_region
      %s41 = ssub.s32 512, 512
      %42 = vsyncadd [#allocation6], %s41
      %s43 = sshll.u32 [#allocation7], 4
      %s44 = int_to_ptr.vmem [resolvable:$true] %s43
      %49 = dma.hbm_to_vmem [thread:$0]  %s3, 512, %s44, [#allocation6], 256, 256, 16
    $region17: #{tpu_custom_call.1} parent=1 // pred_fallthru
      _
    // Predicated region
    $region18: #{tpu_custom_call.1} parent=1 // pred_check
      _
    $region19: #{tpu_custom_call.1} parent=1 // pred_check_branch
      %51 = sbr.rel (0) target = $region21
    $region20: #{tpu_custom_call.1} parent=1 // pred_region
      %52 = dma.done [#allocation3], 128
    $region21: #{tpu_custom_call.1} parent=1 // pred_fallthru
      _
    // Predicated region
    $region22: #{tpu_custom_call.1} parent=1 // pred_check
      _
    $region23: #{tpu_custom_call.1} parent=1 // pred_check_branch
      %54 = sbr.rel (0) target = $region25
    $region24: #{tpu_custom_call.1} parent=1 // pred_region
      %55 = dma.done [#allocation6], 2048
    $region25: #{tpu_custom_call.1} parent=1 // pred_fallthru
      _
    // Predicated region
    $region26: #{tpu_custom_call.1} parent=1 // pred_check
      _
    $region27: #{tpu_custom_call.1} parent=1 // pred_check_branch
      %57 = sbr.rel (0) target = $region29
    $region28: #{tpu_custom_call.1} parent=1 // pred_region
      %58 = dma.done [#allocation6], 512
    $region29: #{tpu_custom_call.1} parent=1 // pred_fallthru
      _
    %v60 = vld [vmem:[#allocation2] sm:$0xf]
    %v61 = vld [vmem:[#allocation2 + $0x4] sm:$0xf]
    %v62 = vld [vmem:[#allocation5] sm:$0xff]
    %v63 = vld [vmem:[#allocation5 + $0x8] sm:$0xff]
    %v64 = vld [vmem:[#allocation5 + $0x10] sm:$0xff]
    %v65 = vld [vmem:[#allocation5 + $0x18] sm:$0xff]
    %v66 = vld [vmem:[#allocation5 + $0x20] sm:$0xff]
    %v67 = vld [vmem:[#allocation5 + $0x28] sm:$0xff]
    %v68 = vld [vmem:[#allocation5 + $0x30] sm:$0xff]
    %v69 = vld [vmem:[#allocation5 + $0x38] sm:$0xff]
    %v70 = vld [vmem:[#allocation5 + $0x40] sm:$0xff]
    %v71 = vld [vmem:[#allocation5 + $0x48] sm:$0xff]
    %v72 = vld [vmem:[#allocation5 + $0x50] sm:$0xff]
    %v73 = vld [vmem:[#allocation5 + $0x58] sm:$0xff]
    %v74 = vld [vmem:[#allocation5 + $0x60] sm:$0xff]
    %v75 = vld [vmem:[#allocation5 + $0x68] sm:$0xff]
    %v76 = vld [vmem:[#allocation5 + $0x70] sm:$0xff]
    %v77 = vld [vmem:[#allocation5 + $0x78] sm:$0xff]
    %v78 = vld [vmem:[%s2] sm:$0x3]
    %v80 = vlaneseq
    %v81 = vshrl.u32 %v80, 7
    %v82 = vsub.s32 0, %v81
    %v83 = vrot.slane %v78, %v82
    %v84 = vlaneseq
    %v85 = vshrl.u32 %v84, 7
    %v86 = vsub.s32 1, %v85
    %v87 = vrot.slane %v78, %v86
    %v92 = vunpack.c.l.b16 %v60
    %v93 = vunpack.c.l.b16 %v61
    %v94 = vpack.c.b16 %v93, %v92
    %v112 = vunpack.c.l.b16 %v62
    %v113 = vunpack.c.h.b16 %v62
    %v114 = vunpack.c.l.b16 %v63
    %v115 = vunpack.c.h.b16 %v63
    %v116 = vunpack.c.l.b16 %v64
    %v117 = vunpack.c.h.b16 %v64
    %v118 = vunpack.c.l.b16 %v65
    %v119 = vunpack.c.h.b16 %v65
    %v120 = vunpack.c.l.b16 %v66
    %v121 = vunpack.c.h.b16 %v66
    %v122 = vunpack.c.l.b16 %v67
    %v123 = vunpack.c.h.b16 %v67
    %v124 = vunpack.c.l.b16 %v68
    %v125 = vunpack.c.h.b16 %v68
    %v126 = vunpack.c.l.b16 %v69
    %v127 = vunpack.c.h.b16 %v69
    %v128 = vunpack.c.l.b16 %v70
    %v129 = vunpack.c.h.b16 %v70
    %v130 = vunpack.c.l.b16 %v71
    %v131 = vunpack.c.h.b16 %v71
    %v132 = vunpack.c.l.b16 %v72
    %v133 = vunpack.c.h.b16 %v72
    %v134 = vunpack.c.l.b16 %v73
    %v135 = vunpack.c.h.b16 %v73
    %v136 = vunpack.c.l.b16 %v74
    %v137 = vunpack.c.h.b16 %v74
    %v138 = vunpack.c.l.b16 %v75
    %v139 = vunpack.c.h.b16 %v75
    %v140 = vunpack.c.l.b16 %v76
    %v141 = vunpack.c.h.b16 %v76
    %v142 = vunpack.c.l.b16 %v77
    %v143 = vunpack.c.h.b16 %v77
    %v144 = vpack.c.b16 %v114, %v112
    %v145 = vpack.c.b16 %v115, %v113
    %v146 = vpack.c.b16 %v118, %v116
    %v147 = vpack.c.b16 %v119, %v117
    %v148 = vpack.c.b16 %v122, %v120
    %v149 = vpack.c.b16 %v123, %v121
    %v150 = vpack.c.b16 %v126, %v124
    %v151 = vpack.c.b16 %v127, %v125
    %v152 = vpack.c.b16 %v130, %v128
    %v153 = vpack.c.b16 %v131, %v129
    %v154 = vpack.c.b16 %v134, %v132
    %v155 = vpack.c.b16 %v135, %v133
    %v156 = vpack.c.b16 %v138, %v136
    %v157 = vpack.c.b16 %v139, %v137
    %v158 = vpack.c.b16 %v142, %v140
    %v159 = vpack.c.b16 %v143, %v141
    %176 = vmatprep.subr.bf16.mxu0 %v159
    %177 = vmatpush1.bf16.msra.mxu0 %v158
    %178 = vmatprep.subr.bf16.mxu0 %v157
    %179 = vmatpush1.bf16.msra.mxu0 %v156
    %180 = vmatprep.subr.bf16.mxu0 %v155
    %181 = vmatpush1.bf16.msra.mxu0 %v154
    %182 = vmatprep.subr.bf16.mxu0 %v153
    %183 = vmatpush1.bf16.msra.mxu0 %v152
    %184 = vmatprep.subr.bf16.mxu0 %v151
    %185 = vmatpush1.bf16.msra.mxu0 %v150
    %186 = vmatprep.subr.bf16.mxu0 %v149
    %187 = vmatpush1.bf16.msra.mxu0 %v148
    %188 = vmatprep.subr.bf16.mxu0 %v147
    %189 = vmatpush1.bf16.msra.mxu0 %v146
    %190 = vmatprep.subr.bf16.mxu0 %v145
    %191 = vmatpush1.bf16.msra.mxu0 %v144
    %192 = vmatprep.subr.bf16.mxu0 0
    %193 = vmatpush2.bf16.msra.mxu0 0
    %194 = vmatprep.subr.bf16.mxu0 0
    %195 = vmatpush2.bf16.msra.mxu0 0
    %196 = vmatprep.subr.bf16.mxu0 0
    %197 = vmatpush2.bf16.msra.mxu0 0
    %198 = vmatprep.subr.bf16.mxu0 0
    %199 = vmatpush2.bf16.msra.mxu0 0
    %200 = vmatprep.subr.bf16.mxu0 0
    %201 = vmatpush2.bf16.msra.mxu0 0
    %202 = vmatprep.subr.bf16.mxu0 0
    %203 = vmatpush2.bf16.msra.mxu0 0
    %204 = vmatprep.subr.bf16.mxu0 0
    %205 = vmatpush2.bf16.msra.mxu0 0
    %206 = vmatprep.subr.bf16.mxu0 0
    %207 = vmatpush2.bf16.msra.mxu0 0
    %208 = vmatprep.mubr.bf16.mxu0 0
    %209 = vmatmul.mubr.bf16.gmra.mxu0 %v94
    %v210 = vpop.f32.mrf.mxu0
    %v211 = vadd.f32 %v83, %v210
    %v212 = vpop.f32.mrf.mxu0
    %v213 = vadd.f32 %v87, %v212
    %v214 = vpop.f32.mrf.mxu0
    %v215 = vadd.f32 %v83, %v214
    %v216 = vpop.f32.mrf.mxu0
    %v217 = vadd.f32 %v87, %v216
    %218 = vdwg.mxu0
    %v219 = vld [vmem:[#allocation7] sm:$0xff]
    %v220 = vld [vmem:[#allocation7 + $0x8] sm:$0xff]
    %v221 = vld [vmem:[#allocation7 + $0x10] sm:$0xff]
    %v222 = vld [vmem:[#allocation7 + $0x18] sm:$0xff]
    %v223 = vxor.u32 %v219, 2147483648
    %v224 = vxor.u32 %v220, 2147483648
    %v225 = vxor.u32 %v221, 2147483648
    %v226 = vxor.u32 %v222, 2147483648
    %v227 = vmul.f32 %v223, 1.442695
    %v228 = vpow.pop %v227
    %v229 = vmul.f32 %v224, 1.442695
    %v230 = vpow.pop %v229
    %v231 = vmul.f32 %v225, 1.442695
    %v232 = vpow.pop %v231
    %v233 = vmul.f32 %v226, 1.442695
    %v234 = vpow.pop %v233
    %v235 = vadd.f32 %v228, 1.0
    %v236 = vadd.f32 %v230, 1.0
    %v237 = vadd.f32 %v232, 1.0
    %v238 = vadd.f32 %v234, 1.0
    %v239 = vrcp.pop %v235
    %v240 = vmul.f32 1.0, %v239
    %v241 = vrcp.pop %v236
    %v242 = vmul.f32 1.0, %v241
    %v243 = vrcp.pop %v237
    %v244 = vmul.f32 1.0, %v243
    %v245 = vrcp.pop %v238
    %v246 = vmul.f32 1.0, %v245
    %v247 = vmul.f32 %v219, %v240
    %v248 = vmul.f32 %v220, %v242
    %v249 = vmul.f32 %v221, %v244
    %v250 = vmul.f32 %v222, %v246
    %v251 = vmul.f32 %v247, %v211
    %v252 = vmul.f32 %v248, %v213
    %v253 = vmul.f32 %v249, %v215
    %v254 = vmul.f32 %v250, %v217
    %255 = vst [vmem:[#allocation8] sm:$0xff] %v251
    %256 = vst [vmem:[#allocation8 + $0x8] sm:$0xff] %v252
    %257 = vst [vmem:[#allocation8 + $0x10] sm:$0xff] %v253
    %258 = vst [vmem:[#allocation8 + $0x18] sm:$0xff] %v254
    // Predicated region
    $region30: #{tpu_custom_call.1} parent=1 // pred_check
      _
    $region31: #{tpu_custom_call.1} parent=1 // pred_check_branch
      %260 = sbr.rel (0) target = $region33
    $region32: #{tpu_custom_call.1} parent=1 // pred_region
      %s262 = ssub.s32 512, 512
      %263 = vsyncadd [#allocation4], %s262
      %s264 = sshll.u32 [#allocation8], 4
      %s265 = int_to_ptr.vmem [resolvable:$true] %s264
      %270 = dma.vmem_to_hbm [thread:$0]  %s265, 512, %s4, [#allocation4], 256, 256, 16
    $region33: #{tpu_custom_call.1} parent=1 // pred_fallthru
      _
    // Predicated region
    $region34: #{tpu_custom_call.1} parent=1 // pred_check
      _
    $region35: #{tpu_custom_call.1} parent=1 // pred_check_branch
      %272 = sbr.rel (0) target = $region37
    $region36: #{tpu_custom_call.1} parent=1 // pred_region
      %273 = dma.done [#allocation4], 512
    $region37: #{tpu_custom_call.1} parent=1 // pred_fallthru
      _
    %274 = vsyncpa [#allocation3], 1
    %275 = vsyncpa [#allocation6], 1
    %276 = vsyncpa [#allocation4], 1

</llo_original>
